<compile_context>
chip_gen: v7x
topology: tpu7x:2x2x1
jax: 0.10.0
libtpu: 0.0.40
codegen_flags: <defaults>
</compile_context>

<pallas_src>
import functools

import jax
import jax.numpy as jnp
from jax.experimental import pallas as pl
from jax.experimental.pallas import tpu as pltpu

LANE = 128


def _round_up(x, m):
    return (x + m - 1) // m * m


def nbeats_block_kernel(x_ref, w1_ref, b1_ref, w2_ref, b2_ref,
                        w3_ref, b3_ref, w4_ref, b4_ref, o_ref):
    """One batch tile: 4x (bf16 matmul, f32 accumulate, bias + LeakyReLU)."""

    def layer(h_bf16, w_ref, b_ref):
        acc = jnp.dot(h_bf16, w_ref[...], preferred_element_type=jnp.float32)
        acc = acc + b_ref[...]                 # bias broadcast over batch, f32
        return jnp.maximum(acc, 0.05 * acc)    # LeakyReLU(0.05), f32 epilogue

    h = layer(x_ref[...], w1_ref, b1_ref)
    h = layer(h.astype(jnp.bfloat16), w2_ref, b2_ref)
    h = layer(h.astype(jnp.bfloat16), w3_ref, b3_ref)
    h = layer(h.astype(jnp.bfloat16), w4_ref, b4_ref)
    o_ref[...] = h.astype(o_ref.dtype)


def _pad2(a, rows, cols, dtype):
    a = a.astype(dtype)
    return jnp.pad(a, ((0, rows - a.shape[0]), (0, cols - a.shape[1])))


@functools.partial(jax.jit, static_argnames=("tb",))
def nbeats_block_forward(x, params, *, tb=None):
    """x: (B, backcastLength) f32.  params: dict of w1,b1,...,w4,b4 (f32)."""
    B, backcast = x.shape
    units = params["w1"].shape[1]

    # Lane-dense padded feature dims.
    kp = _round_up(backcast, LANE)
    up = _round_up(units, LANE)

    # Batch tile: multiple of 16 (bf16 sublane packing), capped at 128 so the
    # live intermediate (TB x units) doesn't spill between the 4 chained dots.
    if tb is None:
        tb = min(128, _round_up(B, 16))
    bp = _round_up(B, tb)

    # Zero-pad + cast.  Padded weight rows/cols and bias cols are zero, so
    # padded lanes of every intermediate are exactly 0 and never leak.
    x_p = _pad2(x, bp, kp, jnp.bfloat16)
    w1 = _pad2(params["w1"], kp, up, jnp.bfloat16)
    w2 = _pad2(params["w2"], up, up, jnp.bfloat16)
    w3 = _pad2(params["w3"], up, up, jnp.bfloat16)
    w4 = _pad2(params["w4"], up, up, jnp.bfloat16)
    b1 = _pad2(params["b1"], 1, up, jnp.float32)
    b2 = _pad2(params["b2"], 1, up, jnp.float32)
    b3 = _pad2(params["b3"], 1, up, jnp.float32)
    b4 = _pad2(params["b4"], 1, up, jnp.float32)

    grid = (pl.cdiv(bp, tb),)

    # Weights/biases: constant index_map -> VMEM-resident across batch steps.
    const = lambda i: (0, 0)
    in_specs = [
        pl.BlockSpec((tb, kp), lambda i: (i, 0)),   # x: streamed over batch
        pl.BlockSpec((kp, up), const),              # w1
        pl.BlockSpec((1, up), const),               # b1
        pl.BlockSpec((up, up), const),              # w2
        pl.BlockSpec((1, up), const),               # b2
        pl.BlockSpec((up, up), const),              # w3
        pl.BlockSpec((1, up), const),               # b3
        pl.BlockSpec((up, up), const),              # w4
        pl.BlockSpec((1, up), const),               # b4
    ]
    out_specs = pl.BlockSpec((tb, up), lambda i: (i, 0))

    out_padded = pl.pallas_call(
        nbeats_block_kernel,
        out_shape=jax.ShapeDtypeStruct((bp, up), jnp.float32),
        grid=grid,
        in_specs=in_specs,
        out_specs=out_specs,
        compiler_params=pltpu.CompilerParams(
            # Batch axis is independent -> megacore-shardable on v7x.
            dimension_semantics=("parallel",)),
    )(x_p, w1, b1, w2, b2, w3, b3, w4, b4)

    return out_padded[:B, :units]


def init_params(key, backcast_length, units):
    """Deterministic synthetic weights (shapes from Block.__init__/postInit)."""
    ks = jax.random.split(key, 8)
    return {
        # fc1: Linear(backcastLength, units); stored (in, out) so kernel does x @ W + b.
        "w1": jax.random.normal(ks[0], (backcast_length, units), jnp.float32) * 0.1,
        "b1": jax.random.normal(ks[1], (1, units), jnp.float32) * 0.1,
        # fc2..fc4: Linear(units, units)
        "w2": jax.random.normal(ks[2], (units, units), jnp.float32) * 0.1,
        "b2": jax.random.normal(ks[3], (1, units), jnp.float32) * 0.1,
        "w3": jax.random.normal(ks[4], (units, units), jnp.float32) * 0.1,
        "b3": jax.random.normal(ks[5], (1, units), jnp.float32) * 0.1,
        "w4": jax.random.normal(ks[6], (units, units), jnp.float32) * 0.1,
        "b4": jax.random.normal(ks[7], (1, units), jnp.float32) * 0.1,
    }


def reference_forward_f32(x, p):
    """Pure-JAX f32 reference matching the PyTorch forward."""
    def lrelu(v):
        return jnp.maximum(v, 0.05 * v)
    h = lrelu(x @ p["w1"] + p["b1"])
    h = lrelu(h @ p["w2"] + p["b2"])
    h = lrelu(h @ p["w3"] + p["b3"])
    h = lrelu(h @ p["w4"] + p["b4"])
    return h


def reference_forward_bf16(x, p):
    """Pure-JAX reference with the kernel's mixed precision (bf16 mul, f32 acc)."""
    def lrelu(v):
        return jnp.maximum(v, 0.05 * v)
    h = x.astype(jnp.bfloat16)
    for i in (1, 2, 3, 4):
        acc = jnp.dot(h, p[f"w{i}"].astype(jnp.bfloat16),
                      preferred_element_type=jnp.float32)
        acc = lrelu(acc + p[f"b{i}"].astype(jnp.float32))
        h = acc.astype(jnp.bfloat16) if i < 4 else acc
    return h


if __name__ == "__main__":
    # Small shapes consistent with the module defaults:
    #   backcastLength=10 (postInit default), units=32, batch=8.
    batch = 8
    backcast_length = 10
    units = 32

    key = jax.random.PRNGKey(0)
    k_x, k_p = jax.random.split(key)
    x = jax.random.normal(k_x, (batch, backcast_length), jnp.float32)
    params = init_params(k_p, backcast_length, units)

    out = nbeats_block_forward(x, params)
    out = jax.block_until_ready(out)
    assert out.shape == (batch, units)

    # Apples-to-apples check against a mixed-precision (bf16 matmul / f32 acc) reference.
    ref_mixed = reference_forward_bf16(x, params)
    assert jnp.allclose(out, ref_mixed, atol=1e-3, rtol=1e-3), "mismatch vs bf16 reference"

    # Sanity check against the full-f32 PyTorch-equivalent reference (bf16 rounding tolerance).
    ref_f32 = reference_forward_f32(x, params)
    assert jnp.allclose(out, ref_f32, atol=5e-2, rtol=5e-2), "mismatch vs f32 reference"

    print("KERNEL_OK")
</pallas_src>

<mosaic_0001>
module attributes {stable_mosaic.version = 11 : i64} {
  func.func @nbeats_block_kernel(%arg0: i32, %arg1: memref<16x128xbf16, #tpu.memory_space<vmem>>, %arg2: memref<128x128xbf16, #tpu.memory_space<vmem>>, %arg3: memref<1x128xf32, #tpu.memory_space<vmem>>, %arg4: memref<128x128xbf16, #tpu.memory_space<vmem>>, %arg5: memref<1x128xf32, #tpu.memory_space<vmem>>, %arg6: memref<128x128xbf16, #tpu.memory_space<vmem>>, %arg7: memref<1x128xf32, #tpu.memory_space<vmem>>, %arg8: memref<128x128xbf16, #tpu.memory_space<vmem>>, %arg9: memref<1x128xf32, #tpu.memory_space<vmem>>, %arg10: memref<16x128xf32, #tpu.memory_space<vmem>>) attributes {dimension_semantics = [#tpu.dimension_semantics<parallel>], iteration_bounds = array<i64: 1>, scalar_prefetch = 0 : i64, scratch_operands = 0 : i64, tpu.core_type = #tpu.core_type<tc>, window_params = [{transform_indices = @transform_0, window_bounds = array<i64: 16, 128>}, {pipeline_mode = #tpu.pipeline_mode<synchronous>, transform_indices = @transform_1, window_bounds = array<i64: 128, 128>}, {pipeline_mode = #tpu.pipeline_mode<synchronous>, transform_indices = @transform_2, window_bounds = array<i64: 1, 128>}, {pipeline_mode = #tpu.pipeline_mode<synchronous>, transform_indices = @transform_3, window_bounds = array<i64: 128, 128>}, {pipeline_mode = #tpu.pipeline_mode<synchronous>, transform_indices = @transform_4, window_bounds = array<i64: 1, 128>}, {pipeline_mode = #tpu.pipeline_mode<synchronous>, transform_indices = @transform_5, window_bounds = array<i64: 128, 128>}, {pipeline_mode = #tpu.pipeline_mode<synchronous>, transform_indices = @transform_6, window_bounds = array<i64: 1, 128>}, {pipeline_mode = #tpu.pipeline_mode<synchronous>, transform_indices = @transform_7, window_bounds = array<i64: 128, 128>}, {pipeline_mode = #tpu.pipeline_mode<synchronous>, transform_indices = @transform_8, window_bounds = array<i64: 1, 128>}, {transform_indices = @transform_9, window_bounds = array<i64: 16, 128>}]} {
    %c0 = arith.constant 0 : index
    %c0_0 = arith.constant 0 : index
    %0 = vector.load %arg1[%c0, %c0_0] : memref<16x128xbf16, #tpu.memory_space<vmem>>, vector<16x128xbf16>
    %c0_1 = arith.constant 0 : index
    %c0_2 = arith.constant 0 : index
    %1 = vector.load %arg2[%c0_1, %c0_2] : memref<128x128xbf16, #tpu.memory_space<vmem>>, vector<128x128xbf16>
    %cst = arith.constant dense<0.000000e+00> : vector<16x128xf32>
    %2 = tpu.matmul %0, %1, %cst {dimension_numbers = #tpu.dot_dimension_numbers<[1], [0], [0], [1], [0, 0, 1, 1], [], []>} : vector<16x128xbf16>, vector<128x128xbf16>, vector<16x128xf32> -> vector<16x128xf32>
    %c0_3 = arith.constant 0 : index
    %c0_4 = arith.constant 0 : index
    %3 = vector.load %arg3[%c0_3, %c0_4] : memref<1x128xf32, #tpu.memory_space<vmem>>, vector<1x128xf32>
    %4 = vector.broadcast %3 : vector<1x128xf32> to vector<16x128xf32>
    %5 = arith.addf %2, %4 : vector<16x128xf32>
    %cst_5 = arith.constant 5.000000e-02 : f32
    %6 = vector.broadcast %cst_5 : f32 to vector<16x128xf32>
    %7 = arith.mulf %6, %5 : vector<16x128xf32>
    %8 = arith.maximumf %5, %7 : vector<16x128xf32>
    %9 = arith.truncf %8 : vector<16x128xf32> to vector<16x128xbf16>
    %c0_6 = arith.constant 0 : index
    %c0_7 = arith.constant 0 : index
    %10 = vector.load %arg4[%c0_6, %c0_7] : memref<128x128xbf16, #tpu.memory_space<vmem>>, vector<128x128xbf16>
    %cst_8 = arith.constant dense<0.000000e+00> : vector<16x128xf32>
    %11 = tpu.matmul %9, %10, %cst_8 {dimension_numbers = #tpu.dot_dimension_numbers<[1], [0], [0], [1], [0, 0, 1, 1], [], []>} : vector<16x128xbf16>, vector<128x128xbf16>, vector<16x128xf32> -> vector<16x128xf32>
    %c0_9 = arith.constant 0 : index
    %c0_10 = arith.constant 0 : index
    %12 = vector.load %arg5[%c0_9, %c0_10] : memref<1x128xf32, #tpu.memory_space<vmem>>, vector<1x128xf32>
    %13 = vector.broadcast %12 : vector<1x128xf32> to vector<16x128xf32>
    %14 = arith.addf %11, %13 : vector<16x128xf32>
    %cst_11 = arith.constant 5.000000e-02 : f32
    %15 = vector.broadcast %cst_11 : f32 to vector<16x128xf32>
    %16 = arith.mulf %15, %14 : vector<16x128xf32>
    %17 = arith.maximumf %14, %16 : vector<16x128xf32>
    %18 = arith.truncf %17 : vector<16x128xf32> to vector<16x128xbf16>
    %c0_12 = arith.constant 0 : index
    %c0_13 = arith.constant 0 : index
    %19 = vector.load %arg6[%c0_12, %c0_13] : memref<128x128xbf16, #tpu.memory_space<vmem>>, vector<128x128xbf16>
    %cst_14 = arith.constant dense<0.000000e+00> : vector<16x128xf32>
    %20 = tpu.matmul %18, %19, %cst_14 {dimension_numbers = #tpu.dot_dimension_numbers<[1], [0], [0], [1], [0, 0, 1, 1], [], []>} : vector<16x128xbf16>, vector<128x128xbf16>, vector<16x128xf32> -> vector<16x128xf32>
    %c0_15 = arith.constant 0 : index
    %c0_16 = arith.constant 0 : index
    %21 = vector.load %arg7[%c0_15, %c0_16] : memref<1x128xf32, #tpu.memory_space<vmem>>, vector<1x128xf32>
    %22 = vector.broadcast %21 : vector<1x128xf32> to vector<16x128xf32>
    %23 = arith.addf %20, %22 : vector<16x128xf32>
    %cst_17 = arith.constant 5.000000e-02 : f32
    %24 = vector.broadcast %cst_17 : f32 to vector<16x128xf32>
    %25 = arith.mulf %24, %23 : vector<16x128xf32>
    %26 = arith.maximumf %23, %25 : vector<16x128xf32>
    %27 = arith.truncf %26 : vector<16x128xf32> to vector<16x128xbf16>
    %c0_18 = arith.constant 0 : index
    %c0_19 = arith.constant 0 : index
    %28 = vector.load %arg8[%c0_18, %c0_19] : memref<128x128xbf16, #tpu.memory_space<vmem>>, vector<128x128xbf16>
    %cst_20 = arith.constant dense<0.000000e+00> : vector<16x128xf32>
    %29 = tpu.matmul %27, %28, %cst_20 {dimension_numbers = #tpu.dot_dimension_numbers<[1], [0], [0], [1], [0, 0, 1, 1], [], []>} : vector<16x128xbf16>, vector<128x128xbf16>, vector<16x128xf32> -> vector<16x128xf32>
    %c0_21 = arith.constant 0 : index
    %c0_22 = arith.constant 0 : index
    %30 = vector.load %arg9[%c0_21, %c0_22] : memref<1x128xf32, #tpu.memory_space<vmem>>, vector<1x128xf32>
    %31 = vector.broadcast %30 : vector<1x128xf32> to vector<16x128xf32>
    %32 = arith.addf %29, %31 : vector<16x128xf32>
    %cst_23 = arith.constant 5.000000e-02 : f32
    %33 = vector.broadcast %cst_23 : f32 to vector<16x128xf32>
    %34 = arith.mulf %33, %32 : vector<16x128xf32>
    %35 = arith.maximumf %32, %34 : vector<16x128xf32>
    %c0_24 = arith.constant 0 : index
    %c0_25 = arith.constant 0 : index
    %36 = vector.load %arg10[%c0_24, %c0_25] : memref<16x128xf32, #tpu.memory_space<vmem>>, vector<16x128xf32>
    tpu.vector_store %arg10[%c0_24, %c0_25], %35 {strides = array<i32>} : memref<16x128xf32, #tpu.memory_space<vmem>>, vector<16x128xf32>,
    return
  }
  func.func @transform_0(%arg0: i32) -> (i32, i32) {
    %c0_i32 = arith.constant 0 : i32
    %c0_i32_0 = arith.constant 0 : i32
    return %arg0, %c0_i32 : i32, i32
  }
  func.func @transform_1(%arg0: i32) -> (i32, i32) {
    %c0_i32 = arith.constant 0 : i32
    %c0_i32_0 = arith.constant 0 : i32
    %c0_i32_1 = arith.constant 0 : i32
    return %c0_i32, %c0_i32_0 : i32, i32
  }
  func.func @transform_2(%arg0: i32) -> (i32, i32) {
    %c0_i32 = arith.constant 0 : i32
    %c0_i32_0 = arith.constant 0 : i32
    %c0_i32_1 = arith.constant 0 : i32
    return %c0_i32, %c0_i32_0 : i32, i32
  }
  func.func @transform_3(%arg0: i32) -> (i32, i32) {
    %c0_i32 = arith.constant 0 : i32
    %c0_i32_0 = arith.constant 0 : i32
    %c0_i32_1 = arith.constant 0 : i32
    return %c0_i32, %c0_i32_0 : i32, i32
  }
  func.func @transform_4(%arg0: i32) -> (i32, i32) {
    %c0_i32 = arith.constant 0 : i32
    %c0_i32_0 = arith.constant 0 : i32
    %c0_i32_1 = arith.constant 0 : i32
    return %c0_i32, %c0_i32_0 : i32, i32
  }
  func.func @transform_5(%arg0: i32) -> (i32, i32) {
    %c0_i32 = arith.constant 0 : i32
    %c0_i32_0 = arith.constant 0 : i32
    %c0_i32_1 = arith.constant 0 : i32
    return %c0_i32, %c0_i32_0 : i32, i32
  }
  func.func @transform_6(%arg0: i32) -> (i32, i32) {
    %c0_i32 = arith.constant 0 : i32
    %c0_i32_0 = arith.constant 0 : i32
    %c0_i32_1 = arith.constant 0 : i32
    return %c0_i32, %c0_i32_0 : i32, i32
  }
  func.func @transform_7(%arg0: i32) -> (i32, i32) {
    %c0_i32 = arith.constant 0 : i32
    %c0_i32_0 = arith.constant 0 : i32
    %c0_i32_1 = arith.constant 0 : i32
    return %c0_i32, %c0_i32_0 : i32, i32
  }
  func.func @transform_8(%arg0: i32) -> (i32, i32) {
    %c0_i32 = arith.constant 0 : i32
    %c0_i32_0 = arith.constant 0 : i32
    %c0_i32_1 = arith.constant 0 : i32
    return %c0_i32, %c0_i32_0 : i32, i32
  }
  func.func @transform_9(%arg0: i32) -> (i32, i32) {
    %c0_i32 = arith.constant 0 : i32
    %c0_i32_0 = arith.constant 0 : i32
    return %arg0, %c0_i32 : i32, i32
  }
}

</mosaic_0001>

<llo_original>
// kernel: nbeats_block_forward.1
$region0: #{nbeats_block_forward.1}
  #allocation0 [shape = 'u32[]', space=smem, size = 0x4, offset = 0x4, fixed_abs, tag = 'smem constant byte address 0x4 - core index']
  #allocation1 [shape = 'u32[144,128]{1,0:T(1,128)}', space=vmem, size = 0x12000, scoped, tag = 'internal scratch']
  %s0 = inlined_call_operand.vmem [shape: bf16[16,128], index: 0, kind: input, shape index: {}]
  %s1 = inlined_call_operand.vmem [shape: bf16[128,128], index: 1, kind: input, shape index: {}]
  %s2 = inlined_call_operand.vmem [shape: f32[1,128], index: 2, kind: input, shape index: {}]
  %s3 = inlined_call_operand.vmem [shape: bf16[128,128], index: 3, kind: input, shape index: {}]
  %s4 = inlined_call_operand.vmem [shape: f32[1,128], index: 4, kind: input, shape index: {}]
  %s5 = inlined_call_operand.vmem [shape: bf16[128,128], index: 5, kind: input, shape index: {}]
  %s6 = inlined_call_operand.vmem [shape: f32[1,128], index: 6, kind: input, shape index: {}]
  %s7 = inlined_call_operand.vmem [shape: bf16[128,128], index: 7, kind: input, shape index: {}]
  %s8 = inlined_call_operand.vmem [shape: f32[1,128], index: 8, kind: input, shape index: {}]
  %s9 = inlined_call_operand.vmem [shape: f32[16,128], index: 9, kind: output, shape index: {}]
  %s10 = sld [smem:[#allocation0]]
  $region46: #{nbeats_block_forward.1} parent=0
    _
  %s12 = ssub.s32 1, %s10
  %s13 = scalar_select 0, %s12, %s10
  // Predicated region
  $region2: #{nbeats_block_forward.1} parent=0 // pred_check
    _
  $region3: #{nbeats_block_forward.1} parent=0 // pred_check_branch
    %15 = sbr.rel (0) target = $region5
  $region4: #{nbeats_block_forward.1} parent=0 // pred_region
    _
  $region5: #{nbeats_block_forward.1} parent=0 // pred_fallthru
    _
  // Predicated region
  $region6: #{nbeats_block_forward.1} parent=0 // pred_check
    _
  $region7: #{nbeats_block_forward.1} parent=0 // pred_check_branch
    %17 = sbr.rel (0) target = $region9
  $region8: #{nbeats_block_forward.1} parent=0 // pred_region
    _
  $region9: #{nbeats_block_forward.1} parent=0 // pred_fallthru
    _
  // Predicated region
  $region10: #{nbeats_block_forward.1} parent=0 // pred_check
    _
  $region11: #{nbeats_block_forward.1} parent=0 // pred_check_branch
    %19 = sbr.rel (0) target = $region13
  $region12: #{nbeats_block_forward.1} parent=0 // pred_region
    _
  $region13: #{nbeats_block_forward.1} parent=0 // pred_fallthru
    _
  // Predicated region
  $region14: #{nbeats_block_forward.1} parent=0 // pred_check
    _
  $region15: #{nbeats_block_forward.1} parent=0 // pred_check_branch
    %21 = sbr.rel (0) target = $region17
  $region16: #{nbeats_block_forward.1} parent=0 // pred_region
    _
  $region17: #{nbeats_block_forward.1} parent=0 // pred_fallthru
    _
  // Predicated region
  $region18: #{nbeats_block_forward.1} parent=0 // pred_check
    _
  $region19: #{nbeats_block_forward.1} parent=0 // pred_check_branch
    %23 = sbr.rel (0) target = $region21
  $region20: #{nbeats_block_forward.1} parent=0 // pred_region
    _
  $region21: #{nbeats_block_forward.1} parent=0 // pred_fallthru
    _
  // Predicated region
  $region22: #{nbeats_block_forward.1} parent=0 // pred_check
    _
  $region23: #{nbeats_block_forward.1} parent=0 // pred_check_branch
    %25 = sbr.rel (0) target = $region25
  $region24: #{nbeats_block_forward.1} parent=0 // pred_region
    _
  $region25: #{nbeats_block_forward.1} parent=0 // pred_fallthru
    _
  // Predicated region
  $region26: #{nbeats_block_forward.1} parent=0 // pred_check
    _
  $region27: #{nbeats_block_forward.1} parent=0 // pred_check_branch
    %27 = sbr.rel (0) target = $region29
  $region28: #{nbeats_block_forward.1} parent=0 // pred_region
    _
  $region29: #{nbeats_block_forward.1} parent=0 // pred_fallthru
    _
  // Predicated region
  $region30: #{nbeats_block_forward.1} parent=0 // pred_check
    _
  $region31: #{nbeats_block_forward.1} parent=0 // pred_check_branch
    %29 = sbr.rel (0) target = $region33
  $region32: #{nbeats_block_forward.1} parent=0 // pred_region
    _
  $region33: #{nbeats_block_forward.1} parent=0 // pred_fallthru
    _
  // Predicated region
  $region34: #{nbeats_block_forward.1} parent=0 // pred_check
    _
  $region35: #{nbeats_block_forward.1} parent=0 // pred_check_branch
    %31 = sbr.rel (0) target = $region37
  $region36: #{nbeats_block_forward.1} parent=0 // pred_region
    _
  $region37: #{nbeats_block_forward.1} parent=0 // pred_fallthru
    _
  %v33 = vld [vmem:[%s0] sm:$0xf]
  %v34 = vld [vmem:[%s0 + $0x4] sm:$0xf]
  %v35 = vld [vmem:[%s1] sm:$0xf]
  %v36 = vld [vmem:[%s1 + $0x4] sm:$0xf]
  %v37 = vld [vmem:[%s1 + $0x8] sm:$0xf]
  %v38 = vld [vmem:[%s1 + $0xc] sm:$0xf]
  %v39 = vld [vmem:[%s1 + $0x10] sm:$0xf]
  %v40 = vld [vmem:[%s1 + $0x14] sm:$0xf]
  %v41 = vld [vmem:[%s1 + $0x18] sm:$0xf]
  %v42 = vld [vmem:[%s1 + $0x1c] sm:$0xf]
  %v43 = vld [vmem:[%s1 + $0x20] sm:$0xf]
  %v44 = vld [vmem:[%s1 + $0x24] sm:$0xf]
  %v45 = vld [vmem:[%s1 + $0x28] sm:$0xf]
  %v46 = vld [vmem:[%s1 + $0x2c] sm:$0xf]
  %v47 = vld [vmem:[%s1 + $0x30] sm:$0xf]
  %v48 = vld [vmem:[%s1 + $0x34] sm:$0xf]
  %v49 = vld [vmem:[%s1 + $0x38] sm:$0xf]
  %v50 = vld [vmem:[%s1 + $0x3c] sm:$0xf]
  %v51 = vld [vmem:[%s2] sm:$0x1]
  %v53 = vlaneseq
  %v54 = vshrl.u32 %v53, 7
  %v55 = vsub.s32 0, %v54
  %v56 = vrot.slane %v51, %v55
  %v60 = vunpack.c.l.b16 %v33
  %v61 = vunpack.c.l.b16 %v34
  %v62 = vpack.c.b16 %v61, %v60
  %v80 = vunpack.c.l.b16 %v35
  %v81 = vunpack.c.l.b16 %v36
  %v82 = vunpack.c.l.b16 %v37
  %v83 = vunpack.c.l.b16 %v38
  %v84 = vunpack.c.l.b16 %v39
  %v85 = vunpack.c.l.b16 %v40
  %v86 = vunpack.c.l.b16 %v41
  %v87 = vunpack.c.l.b16 %v42
  %v88 = vunpack.c.l.b16 %v43
  %v89 = vunpack.c.l.b16 %v44
  %v90 = vunpack.c.l.b16 %v45
  %v91 = vunpack.c.l.b16 %v46
  %v92 = vunpack.c.l.b16 %v47
  %v93 = vunpack.c.l.b16 %v48
  %v94 = vunpack.c.l.b16 %v49
  %v95 = vunpack.c.l.b16 %v50
  %v96 = vpack.c.b16 %v81, %v80
  %v97 = vpack.c.b16 %v83, %v82
  %v98 = vpack.c.b16 %v85, %v84
  %v99 = vpack.c.b16 %v87, %v86
  %v100 = vpack.c.b16 %v89, %v88
  %v101 = vpack.c.b16 %v91, %v90
  %v102 = vpack.c.b16 %v93, %v92
  %v103 = vpack.c.b16 %v95, %v94
  %112 = vmatprep.subr.bf16.mxu0 0
  %113 = vmatpush1.bf16.msra.mxu0 %v96
  %114 = vmatprep.subr.bf16.mxu0 0
  %115 = vmatpush1.bf16.msra.mxu0 %v97
  %116 = vmatprep.subr.bf16.mxu0 0
  %117 = vmatpush1.bf16.msra.mxu0 %v98
  %118 = vmatprep.subr.bf16.mxu0 0
  %119 = vmatpush1.bf16.msra.mxu0 %v99
  %120 = vmatprep.subr.bf16.mxu0 0
  %121 = vmatpush1.bf16.msra.mxu0 %v100
  %122 = vmatprep.subr.bf16.mxu0 0
  %123 = vmatpush1.bf16.msra.mxu0 %v101
  %124 = vmatprep.subr.bf16.mxu0 0
  %125 = vmatpush1.bf16.msra.mxu0 %v102
  %126 = vmatprep.subr.bf16.mxu0 0
  %127 = vmatpush1.bf16.msra.mxu0 %v103
  %128 = vmatprep.subr.bf16.mxu0 0
  %129 = vmatpush1.bf16.msra.mxu0 0
  %130 = vmatprep.subr.bf16.mxu0 0
  %131 = vmatpush1.bf16.msra.mxu0 0
  %132 = vmatprep.subr.bf16.mxu0 0
  %133 = vmatpush1.bf16.msra.mxu0 0
  %134 = vmatprep.subr.bf16.mxu0 0
  %135 = vmatpush1.bf16.msra.mxu0 0
  %136 = vmatprep.subr.bf16.mxu0 0
  %137 = vmatpush1.bf16.msra.mxu0 0
  %138 = vmatprep.subr.bf16.mxu0 0
  %139 = vmatpush1.bf16.msra.mxu0 0
  %140 = vmatprep.subr.bf16.mxu0 0
  %141 = vmatpush1.bf16.msra.mxu0 0
  %142 = vmatprep.subr.bf16.mxu0 0
  %143 = vmatpush1.bf16.msra.mxu0 0
  %144 = vmatprep.mubr.bf16.mxu0 0
  %145 = vmatmul.mubr.bf16.gmra.mrb[0].mxu0 %v62
  %v146 = vpop.f32.mrb[0].mxu0
  %v147 = vadd.f32 %v56, %v146
  %v148 = vpop.f32.mrb[0].mxu0
  %v149 = vpop.f32.mrb[0].mxu0
  %v150 = vadd.f32 %v56, %v149
  %v151 = vpop.f32.mrb[0].mxu0
  %152 = vdwg.mxu0
  %v153 = vmul.f32 %v147, 0.05
  %v154 = vmul.f32 %v150, 0.05
  %v155 = vmax.f32 %v147, %v153
  %v156 = vmax.f32 %v150, %v154
  %v157 = vpack.c.bf16 %v156, %v155
  %v158 = vld [vmem:[%s3] sm:$0xf]
  %v159 = vld [vmem:[%s3 + $0x4] sm:$0xf]
  %v160 = vld [vmem:[%s3 + $0x8] sm:$0xf]
  %v161 = vld [vmem:[%s3 + $0xc] sm:$0xf]
  %v162 = vld [vmem:[%s3 + $0x10] sm:$0xf]
  %v163 = vld [vmem:[%s3 + $0x14] sm:$0xf]
  %v164 = vld [vmem:[%s3 + $0x18] sm:$0xf]
  %v165 = vld [vmem:[%s3 + $0x1c] sm:$0xf]
  %v166 = vld [vmem:[%s3 + $0x20] sm:$0xf]
  %v167 = vld [vmem:[%s3 + $0x24] sm:$0xf]
  %v168 = vld [vmem:[%s3 + $0x28] sm:$0xf]
  %v169 = vld [vmem:[%s3 + $0x2c] sm:$0xf]
  %v170 = vld [vmem:[%s3 + $0x30] sm:$0xf]
  %v171 = vld [vmem:[%s3 + $0x34] sm:$0xf]
  %v172 = vld [vmem:[%s3 + $0x38] sm:$0xf]
  %v173 = vld [vmem:[%s3 + $0x3c] sm:$0xf]
  %v174 = vld [vmem:[%s4] sm:$0x1]
  %v176 = vlaneseq
  %v177 = vshrl.u32 %v176, 7
  %v178 = vsub.s32 0, %v177
  %v179 = vrot.slane %v174, %v178
  %v197 = vunpack.c.l.b16 %v158
  %v198 = vunpack.c.l.b16 %v159
  %v199 = vunpack.c.l.b16 %v160
  %v200 = vunpack.c.l.b16 %v161
  %v201 = vunpack.c.l.b16 %v162
  %v202 = vunpack.c.l.b16 %v163
  %v203 = vunpack.c.l.b16 %v164
  %v204 = vunpack.c.l.b16 %v165
  %v205 = vunpack.c.l.b16 %v166
  %v206 = vunpack.c.l.b16 %v167
  %v207 = vunpack.c.l.b16 %v168
  %v208 = vunpack.c.l.b16 %v169
  %v209 = vunpack.c.l.b16 %v170
  %v210 = vunpack.c.l.b16 %v171
  %v211 = vunpack.c.l.b16 %v172
  %v212 = vunpack.c.l.b16 %v173
  %v213 = vpack.c.b16 %v198, %v197
  %v214 = vpack.c.b16 %v200, %v199
  %v215 = vpack.c.b16 %v202, %v201
  %v216 = vpack.c.b16 %v204, %v203
  %v217 = vpack.c.b16 %v206, %v205
  %v218 = vpack.c.b16 %v208, %v207
  %v219 = vpack.c.b16 %v210, %v209
  %v220 = vpack.c.b16 %v212, %v211
  %229 = vmatprep.subr.bf16.mxu0 0
  %230 = vmatpush1.bf16.msra.mxu0 %v213
  %231 = vmatprep.subr.bf16.mxu0 0
  %232 = vmatpush1.bf16.msra.mxu0 %v214
  %233 = vmatprep.subr.bf16.mxu0 0
  %234 = vmatpush1.bf16.msra.mxu0 %v215
  %235 = vmatprep.subr.bf16.mxu0 0
  %236 = vmatpush1.bf16.msra.mxu0 %v216
  %237 = vmatprep.subr.bf16.mxu0 0
  %238 = vmatpush1.bf16.msra.mxu0 %v217
  %239 = vmatprep.subr.bf16.mxu0 0
  %240 = vmatpush1.bf16.msra.mxu0 %v218
  %241 = vmatprep.subr.bf16.mxu0 0
  %242 = vmatpush1.bf16.msra.mxu0 %v219
  %243 = vmatprep.subr.bf16.mxu0 0
  %244 = vmatpush1.bf16.msra.mxu0 %v220
  %245 = vmatprep.subr.bf16.mxu0 0
  %246 = vmatpush1.bf16.msra.mxu0 0
  %247 = vmatprep.subr.bf16.mxu0 0
  %248 = vmatpush1.bf16.msra.mxu0 0
  %249 = vmatprep.subr.bf16.mxu0 0
  %250 = vmatpush1.bf16.msra.mxu0 0
  %251 = vmatprep.subr.bf16.mxu0 0
  %252 = vmatpush1.bf16.msra.mxu0 0
  %253 = vmatprep.subr.bf16.mxu0 0
  %254 = vmatpush1.bf16.msra.mxu0 0
  %255 = vmatprep.subr.bf16.mxu0 0
  %256 = vmatpush1.bf16.msra.mxu0 0
  %257 = vmatprep.subr.bf16.mxu0 0
  %258 = vmatpush1.bf16.msra.mxu0 0
  %259 = vmatprep.subr.bf16.mxu0 0
  %260 = vmatpush1.bf16.msra.mxu0 0
  %261 = vmatprep.mubr.bf16.mxu0 0
  %262 = vmatmul.mubr.bf16.gmra.mrb[0].mxu0 %v157
  %v263 = vpop.f32.mrb[0].mxu0
  %v264 = vadd.f32 %v179, %v263
  %v265 = vpop.f32.mrb[0].mxu0
  %v266 = vpop.f32.mrb[0].mxu0
  %v267 = vadd.f32 %v179, %v266
  %v268 = vpop.f32.mrb[0].mxu0
  %269 = vdwg.mxu0
  %v270 = vmul.f32 %v264, 0.05
  %v271 = vmul.f32 %v267, 0.05
  %v272 = vmax.f32 %v264, %v270
  %v273 = vmax.f32 %v267, %v271
  %v274 = vpack.c.bf16 %v273, %v272
  %v275 = vld [vmem:[%s5] sm:$0xf]
  %v276 = vld [vmem:[%s5 + $0x4] sm:$0xf]
  %v277 = vld [vmem:[%s5 + $0x8] sm:$0xf]
  %v278 = vld [vmem:[%s5 + $0xc] sm:$0xf]
  %v279 = vld [vmem:[%s5 + $0x10] sm:$0xf]
  %v280 = vld [vmem:[%s5 + $0x14] sm:$0xf]
  %v281 = vld [vmem:[%s5 + $0x18] sm:$0xf]
  %v282 = vld [vmem:[%s5 + $0x1c] sm:$0xf]
  %v283 = vld [vmem:[%s5 + $0x20] sm:$0xf]
  %v284 = vld [vmem:[%s5 + $0x24] sm:$0xf]
  %v285 = vld [vmem:[%s5 + $0x28] sm:$0xf]
  %v286 = vld [vmem:[%s5 + $0x2c] sm:$0xf]
  %v287 = vld [vmem:[%s5 + $0x30] sm:$0xf]
  %v288 = vld [vmem:[%s5 + $0x34] sm:$0xf]
  %v289 = vld [vmem:[%s5 + $0x38] sm:$0xf]
  %v290 = vld [vmem:[%s5 + $0x3c] sm:$0xf]
  %v291 = vld [vmem:[%s6] sm:$0x1]
  %v293 = vlaneseq
  %v294 = vshrl.u32 %v293, 7
  %v295 = vsub.s32 0, %v294
  %v296 = vrot.slane %v291, %v295
  %v314 = vunpack.c.l.b16 %v275
  %v315 = vunpack.c.l.b16 %v276
  %v316 = vunpack.c.l.b16 %v277
  %v317 = vunpack.c.l.b16 %v278
  %v318 = vunpack.c.l.b16 %v279
  %v319 = vunpack.c.l.b16 %v280
  %v320 = vunpack.c.l.b16 %v281
  %v321 = vunpack.c.l.b16 %v282
  %v322 = vunpack.c.l.b16 %v283
  %v323 = vunpack.c.l.b16 %v284
  %v324 = vunpack.c.l.b16 %v285
  %v325 = vunpack.c.l.b16 %v286
  %v326 = vunpack.c.l.b16 %v287
  %v327 = vunpack.c.l.b16 %v288
  %v328 = vunpack.c.l.b16 %v289
  %v329 = vunpack.c.l.b16 %v290
  %v330 = vpack.c.b16 %v315, %v314
  %v331 = vpack.c.b16 %v317, %v316
  %v332 = vpack.c.b16 %v319, %v318
  %v333 = vpack.c.b16 %v321, %v320
  %v334 = vpack.c.b16 %v323, %v322
  %v335 = vpack.c.b16 %v325, %v324
  %v336 = vpack.c.b16 %v327, %v326
  %v337 = vpack.c.b16 %v329, %v328
  %346 = vmatprep.subr.bf16.mxu0 0
  %347 = vmatpush1.bf16.msra.mxu0 %v330
  %348 = vmatprep.subr.bf16.mxu0 0
  %349 = vmatpush1.bf16.msra.mxu0 %v331
  %350 = vmatprep.subr.bf16.mxu0 0
  %351 = vmatpush1.bf16.msra.mxu0 %v332
  %352 = vmatprep.subr.bf16.mxu0 0
  %353 = vmatpush1.bf16.msra.mxu0 %v333
  %354 = vmatprep.subr.bf16.mxu0 0
  %355 = vmatpush1.bf16.msra.mxu0 %v334
  %356 = vmatprep.subr.bf16.mxu0 0
  %357 = vmatpush1.bf16.msra.mxu0 %v335
  %358 = vmatprep.subr.bf16.mxu0 0
  %359 = vmatpush1.bf16.msra.mxu0 %v336
  %360 = vmatprep.subr.bf16.mxu0 0
  %361 = vmatpush1.bf16.msra.mxu0 %v337
  %362 = vmatprep.subr.bf16.mxu0 0
  %363 = vmatpush1.bf16.msra.mxu0 0
  %364 = vmatprep.subr.bf16.mxu0 0
  %365 = vmatpush1.bf16.msra.mxu0 0
  %366 = vmatprep.subr.bf16.mxu0 0
  %367 = vmatpush1.bf16.msra.mxu0 0
  %368 = vmatprep.subr.bf16.mxu0 0
  %369 = vmatpush1.bf16.msra.mxu0 0
  %370 = vmatprep.subr.bf16.mxu0 0
  %371 = vmatpush1.bf16.msra.mxu0 0
  %372 = vmatprep.subr.bf16.mxu0 0
  %373 = vmatpush1.bf16.msra.mxu0 0
  %374 = vmatprep.subr.bf16.mxu0 0
  %375 = vmatpush1.bf16.msra.mxu0 0
  %376 = vmatprep.subr.bf16.mxu0 0
  %377 = vmatpush1.bf16.msra.mxu0 0
  %378 = vmatprep.mubr.bf16.mxu0 0
  %379 = vmatmul.mubr.bf16.gmra.mrb[0].mxu0 %v274
  %v380 = vpop.f32.mrb[0].mxu0
  %v381 = vadd.f32 %v296, %v380
  %v382 = vpop.f32.mrb[0].mxu0
  %v383 = vpop.f32.mrb[0].mxu0
  %v384 = vadd.f32 %v296, %v383
  %v385 = vpop.f32.mrb[0].mxu0
  %386 = vdwg.mxu0
  %v387 = vmul.f32 %v381, 0.05
  %v388 = vmul.f32 %v384, 0.05
  %v389 = vmax.f32 %v381, %v387
  %v390 = vmax.f32 %v384, %v388
  %v391 = vpack.c.bf16 %v390, %v389
  %v392 = vld [vmem:[%s7] sm:$0xf]
  %v393 = vld [vmem:[%s7 + $0x4] sm:$0xf]
  %v394 = vld [vmem:[%s7 + $0x8] sm:$0xf]
  %v395 = vld [vmem:[%s7 + $0xc] sm:$0xf]
  %v396 = vld [vmem:[%s7 + $0x10] sm:$0xf]
  %v397 = vld [vmem:[%s7 + $0x14] sm:$0xf]
  %v398 = vld [vmem:[%s7 + $0x18] sm:$0xf]
  %v399 = vld [vmem:[%s7 + $0x1c] sm:$0xf]
  %v400 = vld [vmem:[%s7 + $0x20] sm:$0xf]
  %v401 = vld [vmem:[%s7 + $0x24] sm:$0xf]
  %v402 = vld [vmem:[%s7 + $0x28] sm:$0xf]
  %v403 = vld [vmem:[%s7 + $0x2c] sm:$0xf]
  %v404 = vld [vmem:[%s7 + $0x30] sm:$0xf]
  %v405 = vld [vmem:[%s7 + $0x34] sm:$0xf]
  %v406 = vld [vmem:[%s7 + $0x38] sm:$0xf]
  %v407 = vld [vmem:[%s7 + $0x3c] sm:$0xf]
  %v408 = vld [vmem:[%s8] sm:$0x1]
  %v410 = vlaneseq
  %v411 = vshrl.u32 %v410, 7
  %v412 = vsub.s32 0, %v411
  %v413 = vrot.slane %v408, %v412
  %v431 = vunpack.c.l.b16 %v392
  %v432 = vunpack.c.l.b16 %v393
  %v433 = vunpack.c.l.b16 %v394
  %v434 = vunpack.c.l.b16 %v395
  %v435 = vunpack.c.l.b16 %v396
  %v436 = vunpack.c.l.b16 %v397
  %v437 = vunpack.c.l.b16 %v398
  %v438 = vunpack.c.l.b16 %v399
  %v439 = vunpack.c.l.b16 %v400
  %v440 = vunpack.c.l.b16 %v401
  %v441 = vunpack.c.l.b16 %v402
  %v442 = vunpack.c.l.b16 %v403
  %v443 = vunpack.c.l.b16 %v404
  %v444 = vunpack.c.l.b16 %v405
  %v445 = vunpack.c.l.b16 %v406
  %v446 = vunpack.c.l.b16 %v407
  %v447 = vpack.c.b16 %v432, %v431
  %v448 = vpack.c.b16 %v434, %v433
  %v449 = vpack.c.b16 %v436, %v435
  %v450 = vpack.c.b16 %v438, %v437
  %v451 = vpack.c.b16 %v440, %v439
  %v452 = vpack.c.b16 %v442, %v441
  %v453 = vpack.c.b16 %v444, %v443
  %v454 = vpack.c.b16 %v446, %v445
  %463 = vmatprep.subr.bf16.mxu0 0
  %464 = vmatpush1.bf16.msra.mxu0 %v447
  %465 = vmatprep.subr.bf16.mxu0 0
  %466 = vmatpush1.bf16.msra.mxu0 %v448
  %467 = vmatprep.subr.bf16.mxu0 0
  %468 = vmatpush1.bf16.msra.mxu0 %v449
  %469 = vmatprep.subr.bf16.mxu0 0
  %470 = vmatpush1.bf16.msra.mxu0 %v450
  %471 = vmatprep.subr.bf16.mxu0 0
  %472 = vmatpush1.bf16.msra.mxu0 %v451
  %473 = vmatprep.subr.bf16.mxu0 0
  %474 = vmatpush1.bf16.msra.mxu0 %v452
  %475 = vmatprep.subr.bf16.mxu0 0
  %476 = vmatpush1.bf16.msra.mxu0 %v453
  %477 = vmatprep.subr.bf16.mxu0 0
  %478 = vmatpush1.bf16.msra.mxu0 %v454
  %479 = vmatprep.subr.bf16.mxu0 0
  %480 = vmatpush1.bf16.msra.mxu0 0
  %481 = vmatprep.subr.bf16.mxu0 0
  %482 = vmatpush1.bf16.msra.mxu0 0
  %483 = vmatprep.subr.bf16.mxu0 0
  %484 = vmatpush1.bf16.msra.mxu0 0
  %485 = vmatprep.subr.bf16.mxu0 0
  %486 = vmatpush1.bf16.msra.mxu0 0
  %487 = vmatprep.subr.bf16.mxu0 0
  %488 = vmatpush1.bf16.msra.mxu0 0
  %489 = vmatprep.subr.bf16.mxu0 0
  %490 = vmatpush1.bf16.msra.mxu0 0
  %491 = vmatprep.subr.bf16.mxu0 0
  %492 = vmatpush1.bf16.msra.mxu0 0
  %493 = vmatprep.subr.bf16.mxu0 0
  %494 = vmatpush1.bf16.msra.mxu0 0
  %495 = vmatprep.mubr.bf16.mxu0 0
  %496 = vmatmul.mubr.bf16.gmra.mrb[0].mxu0 %v391
  %v497 = vpop.f32.mrb[0].mxu0
  %v498 = vadd.f32 %v413, %v497
  %v499 = vpop.f32.mrb[0].mxu0
  %v500 = vpop.f32.mrb[0].mxu0
  %v501 = vadd.f32 %v413, %v500
  %v502 = vpop.f32.mrb[0].mxu0
  %503 = vdwg.mxu0
  %v504 = vmul.f32 %v498, 0.05
  %v505 = vmul.f32 %v501, 0.05
  %v506 = vmax.f32 %v498, %v504
  %v507 = vmax.f32 %v501, %v505
  %508 = vst [vmem:[%s9] sm:$0xff] %v506
  %509 = vst [vmem:[%s9 + $0x8] sm:$0xff] %v507
  // Predicated region
  $region38: #{nbeats_block_forward.1} parent=0 // pred_check
    _
  $region39: #{nbeats_block_forward.1} parent=0 // pred_check_branch
    %511 = sbr.rel (0) target = $region41
  $region40: #{nbeats_block_forward.1} parent=0 // pred_region
    _
  $region41: #{nbeats_block_forward.1} parent=0 // pred_fallthru
    _
  // Predicated region
  $region42: #{nbeats_block_forward.1} parent=0 // pred_check
    _
  $region43: #{nbeats_block_forward.1} parent=0 // pred_check_branch
    %513 = sbr.rel (0) target = $region45
  $region44: #{nbeats_block_forward.1} parent=0 // pred_region
    _
  $region45: #{nbeats_block_forward.1} parent=0 // pred_fallthru
    _

</llo_original>
